<compile_context>
chip_gen: v7x
topology: tpu7x:2x2x1
jax: 0.10.0
libtpu: 0.0.40
codegen_flags: <defaults>
</compile_context>

<pallas_src>
import jax
import jax.numpy as jnp
from jax.experimental import pallas as pl
from jax.experimental.pallas import tpu as pltpu


def _round_up(x, m):
    return ((x + m - 1) // m) * m


def _discriminator_kernel(x_ref, w1_ref, b1_ref, w2_ref, b2_ref,
                          logits_ref, hidden_ref):
    # dense: x @ W1 + b1 on the MXU, f32 accumulation (inputs may be bf16).
    h = jnp.dot(x_ref[...], w1_ref[...], preferred_element_type=jnp.float32)
    h = h + b1_ref[...].astype(jnp.float32)

    # LeakyReLU (nn.LeakyReLU default negative_slope = 0.01), runs on the VPU
    # in the f32 accumulator.
    h = jnp.where(h > 0, h, 0.01 * h)

    # TODO(synk): training-mode dropout would need pltpu.prng_seed +
    # pltpu.stateful_bernoulli; eval-mode nn.Dropout is identity.
    h_store = h.astype(hidden_ref.dtype)
    hidden_ref[...] = h_store

    # classifier: h @ W2 + b2 (MXU), lane-dense (C padded to 128).
    logits = jnp.dot(h_store, w2_ref[...], preferred_element_type=jnp.float32)
    logits = logits + b2_ref[...].astype(jnp.float32)
    logits_ref[...] = logits.astype(logits_ref.dtype)


def gan_discriminator(x, w1, b1, w2, b2, *, tile_m=512):
    """GanDiscriminator forward.

    Args:
      x:  [M, H] activations (f32 or bf16).  M = batch * seq.
      w1: [H, H] dense weight, stored [in, out] (i.e. PyTorch weight.T).
      b1: [H] or [1, H] dense bias.
      w2: [H, C] classifier weight, stored [in, out]; C = num_labels + 1.
      b2: [C] or [1, C] classifier bias.
      tile_m: row-tile size (rows per grid step).

    Returns:
      (logits [M, C], hidden_states [M, H]) in x.dtype.
    """
    M, H = x.shape
    C = w2.shape[1]
    dtype = x.dtype

    # Lane-dense padding (last dims -> multiples of 128) and row padding so the
    # row tile is a multiple of 8 sublanes and divides the padded M.
    Hp = _round_up(H, 128)
    Cp = _round_up(C, 128)
    Mp = _round_up(M, 8)
    tm = min(tile_m, Mp)
    Mp = _round_up(Mp, tm)
    n_tiles = Mp // tm

    b1 = jnp.reshape(b1, (1, -1))
    b2 = jnp.reshape(b2, (1, -1))

    x_p = jnp.pad(x, ((0, Mp - M), (0, Hp - H)))
    w1_p = jnp.pad(w1.astype(dtype), ((0, Hp - H), (0, Hp - H)))
    b1_p = jnp.pad(b1.astype(dtype), ((0, 0), (0, Hp - H)))
    w2_p = jnp.pad(w2.astype(dtype), ((0, Hp - H), (0, Cp - C)))
    b2_p = jnp.pad(b2.astype(dtype), ((0, 0), (0, Cp - C)))

    nbytes = jnp.dtype(dtype).itemsize
    cost = pl.CostEstimate(
        flops=2 * Mp * Hp * (Hp + Cp),
        transcendentals=0,
        bytes_accessed=(Mp * Hp * 2 + Hp * Hp + Hp * Cp + Mp * Cp + Hp + Cp)
        * nbytes,
    )

    logits_p, hidden_p = pl.pallas_call(
        _discriminator_kernel,
        out_shape=(
            jax.ShapeDtypeStruct((Mp, Cp), dtype),
            jax.ShapeDtypeStruct((Mp, Hp), dtype),
        ),
        grid=(n_tiles,),
        in_specs=[
            pl.BlockSpec((tm, Hp), lambda i: (i, 0)),   # x row-tile
            pl.BlockSpec((Hp, Hp), lambda i: (0, 0)),   # w1, VMEM-resident
            pl.BlockSpec((1, Hp), lambda i: (0, 0)),    # b1, VMEM-resident
            pl.BlockSpec((Hp, Cp), lambda i: (0, 0)),   # w2, VMEM-resident
            pl.BlockSpec((1, Cp), lambda i: (0, 0)),    # b2, VMEM-resident
        ],
        out_specs=(
            pl.BlockSpec((tm, Cp), lambda i: (i, 0)),   # logits (lane-dense)
            pl.BlockSpec((tm, Hp), lambda i: (i, 0)),   # hidden (lane-dense)
        ),
        compiler_params=pltpu.CompilerParams(
            # Row tiles are independent -> shard across TCs on v7x.
            dimension_semantics=("parallel",),
            # NOTE: for very large gan_hidden_size (>= ~2048 on v7x's 64 MiB
            # VMEM) also set vmem_limit_bytes and shrink tile_m so
            # W1 + 2x(input+output tiles) fits the scoped VMEM budget.
        ),
        cost_estimate=cost,
    )(x_p, w1_p, b1_p, w2_p, b2_p)

    # Strip lane/row padding before anything downstream (softmax/CE over the
    # real num_labels+1 classes must not see the padded zero columns).
    return logits_p[:M, :C], hidden_p[:M, :H]


def reference(x, w1, b1, w2, b2):
    h = x @ w1 + jnp.reshape(b1, (1, -1))
    h = jnp.where(h > 0, h, 0.01 * h)
    logits = h @ w2 + jnp.reshape(b2, (1, -1))
    return logits, h


if __name__ == "__main__":
    # config: gan_hidden_size=32, num_labels=3 -> classifier out = 4
    batch, seq, hidden_size, num_labels = 2, 8, 32, 3
    n_cls = num_labels + 1
    M = batch * seq

    key = jax.random.PRNGKey(0)
    k_x, k_w1, k_b1, k_w2, k_b2 = jax.random.split(key, 5)

    # hidden_states input: [batch, seq, H] -> flattened to [M, H] for the kernel
    x3d = jax.random.normal(k_x, (batch, seq, hidden_size), dtype=jnp.float32)
    x = x3d.reshape(M, hidden_size)

    # PyTorch-style params (Linear weight is [out, in]; transpose to [in, out]).
    bound1 = 1.0 / jnp.sqrt(hidden_size)
    w1_pt = jax.random.uniform(k_w1, (hidden_size, hidden_size),
                               minval=-bound1, maxval=bound1, dtype=jnp.float32)
    b1_pt = jax.random.uniform(k_b1, (hidden_size,),
                               minval=-bound1, maxval=bound1, dtype=jnp.float32)
    w2_pt = jax.random.uniform(k_w2, (n_cls, hidden_size),
                               minval=-bound1, maxval=bound1, dtype=jnp.float32)
    b2_pt = jax.random.uniform(k_b2, (n_cls,),
                               minval=-bound1, maxval=bound1, dtype=jnp.float32)

    w1 = w1_pt.T                      # [H, H]
    b1 = b1_pt                        # [H]
    w2 = w2_pt.T                      # [H, C]
    b2 = b2_pt                        # [C]

    # ---- f32 path: exact-ish check against pure-JAX reference --------------
    logits, hidden = gan_discriminator(x, w1, b1, w2, b2)
    jax.block_until_ready((logits, hidden))

    ref_logits, ref_hidden = reference(x, w1, b1, w2, b2)
    assert logits.shape == (M, n_cls)
    assert hidden.shape == (M, hidden_size)
    assert jnp.allclose(logits, ref_logits, atol=1e-5, rtol=1e-5)
    assert jnp.allclose(hidden, ref_hidden, atol=1e-5, rtol=1e-5)

    # ---- bf16 path: halves HBM traffic, f32 MXU accumulation ----------------
    xb = x.astype(jnp.bfloat16)
    logits_b, hidden_b = gan_discriminator(xb, w1, b1, w2, b2)
    jax.block_until_ready((logits_b, hidden_b))

    ref_logits_b, ref_hidden_b = reference(
        xb.astype(jnp.float32),
        w1.astype(jnp.bfloat16).astype(jnp.float32), b1,
        w2.astype(jnp.bfloat16).astype(jnp.float32), b2)
    assert logits_b.dtype == jnp.bfloat16 and hidden_b.dtype == jnp.bfloat16
    assert jnp.allclose(logits_b.astype(jnp.float32), ref_logits_b,
                        atol=6e-2, rtol=6e-2)
    assert jnp.allclose(hidden_b.astype(jnp.float32), ref_hidden_b,
                        atol=6e-2, rtol=6e-2)

    # reshape back to [batch, seq, ...] to mirror PyTorch's output convention
    logits = logits.reshape(batch, seq, n_cls)
    hidden = hidden.reshape(batch, seq, hidden_size)
    jax.block_until_ready((logits, hidden))

    print("KERNEL_OK")
</pallas_src>

<mosaic_0001>
module attributes {stable_mosaic.version = 11 : i64} {
  func.func @_discriminator_kernel(%arg0: i32, %arg1: memref<16x128xf32, #tpu.memory_space<vmem>>, %arg2: memref<128x128xf32, #tpu.memory_space<vmem>>, %arg3: memref<1x128xf32, #tpu.memory_space<vmem>>, %arg4: memref<128x128xf32, #tpu.memory_space<vmem>>, %arg5: memref<1x128xf32, #tpu.memory_space<vmem>>, %arg6: memref<16x128xf32, #tpu.memory_space<vmem>>, %arg7: memref<16x128xf32, #tpu.memory_space<vmem>>) attributes {dimension_semantics = [#tpu.dimension_semantics<parallel>], iteration_bounds = array<i64: 1>, scalar_prefetch = 0 : i64, scratch_operands = 0 : i64, tpu.core_type = #tpu.core_type<tc>, window_params = [{transform_indices = @transform_0, window_bounds = array<i64: 16, 128>}, {pipeline_mode = #tpu.pipeline_mode<synchronous>, transform_indices = @transform_1, window_bounds = array<i64: 128, 128>}, {pipeline_mode = #tpu.pipeline_mode<synchronous>, transform_indices = @transform_2, window_bounds = array<i64: 1, 128>}, {pipeline_mode = #tpu.pipeline_mode<synchronous>, transform_indices = @transform_3, window_bounds = array<i64: 128, 128>}, {pipeline_mode = #tpu.pipeline_mode<synchronous>, transform_indices = @transform_4, window_bounds = array<i64: 1, 128>}, {transform_indices = @transform_5, window_bounds = array<i64: 16, 128>}, {transform_indices = @transform_6, window_bounds = array<i64: 16, 128>}]} {
    %c0 = arith.constant 0 : index
    %c0_0 = arith.constant 0 : index
    %0 = vector.load %arg1[%c0, %c0_0] : memref<16x128xf32, #tpu.memory_space<vmem>>, vector<16x128xf32>
    %c0_1 = arith.constant 0 : index
    %c0_2 = arith.constant 0 : index
    %1 = vector.load %arg2[%c0_1, %c0_2] : memref<128x128xf32, #tpu.memory_space<vmem>>, vector<128x128xf32>
    %cst = arith.constant dense<0.000000e+00> : vector<16x128xf32>
    %2 = tpu.matmul %0, %1, %cst {dimension_numbers = #tpu.dot_dimension_numbers<[1], [0], [0], [1], [0, 0, 1, 1], [], []>} : vector<16x128xf32>, vector<128x128xf32>, vector<16x128xf32> -> vector<16x128xf32>
    %c0_3 = arith.constant 0 : index
    %c0_4 = arith.constant 0 : index
    %3 = vector.load %arg3[%c0_3, %c0_4] : memref<1x128xf32, #tpu.memory_space<vmem>>, vector<1x128xf32>
    %4 = vector.broadcast %3 : vector<1x128xf32> to vector<16x128xf32>
    %5 = arith.addf %2, %4 : vector<16x128xf32>
    %cst_5 = arith.constant 0.000000e+00 : f32
    %6 = vector.broadcast %cst_5 : f32 to vector<16x128xf32>
    %7 = arith.cmpf ogt, %5, %6 : vector<16x128xf32>
    %cst_6 = arith.constant 0.00999999977 : f32
    %8 = vector.broadcast %cst_6 : f32 to vector<16x128xf32>
    %9 = arith.mulf %8, %5 : vector<16x128xf32>
    %10 = arith.select %7, %5, %9 : vector<16x128xi1>, vector<16x128xf32>
    %c0_7 = arith.constant 0 : index
    %c0_8 = arith.constant 0 : index
    %11 = vector.load %arg7[%c0_7, %c0_8] : memref<16x128xf32, #tpu.memory_space<vmem>>, vector<16x128xf32>
    tpu.vector_store %arg7[%c0_7, %c0_8], %10 {strides = array<i32>} : memref<16x128xf32, #tpu.memory_space<vmem>>, vector<16x128xf32>,
    %c0_9 = arith.constant 0 : index
    %c0_10 = arith.constant 0 : index
    %12 = vector.load %arg4[%c0_9, %c0_10] : memref<128x128xf32, #tpu.memory_space<vmem>>, vector<128x128xf32>
    %cst_11 = arith.constant dense<0.000000e+00> : vector<16x128xf32>
    %13 = tpu.matmul %10, %12, %cst_11 {dimension_numbers = #tpu.dot_dimension_numbers<[1], [0], [0], [1], [0, 0, 1, 1], [], []>} : vector<16x128xf32>, vector<128x128xf32>, vector<16x128xf32> -> vector<16x128xf32>
    %c0_12 = arith.constant 0 : index
    %c0_13 = arith.constant 0 : index
    %14 = vector.load %arg5[%c0_12, %c0_13] : memref<1x128xf32, #tpu.memory_space<vmem>>, vector<1x128xf32>
    %15 = vector.broadcast %14 : vector<1x128xf32> to vector<16x128xf32>
    %16 = arith.addf %13, %15 : vector<16x128xf32>
    %c0_14 = arith.constant 0 : index
    %c0_15 = arith.constant 0 : index
    %17 = vector.load %arg6[%c0_14, %c0_15] : memref<16x128xf32, #tpu.memory_space<vmem>>, vector<16x128xf32>
    tpu.vector_store %arg6[%c0_14, %c0_15], %16 {strides = array<i32>} : memref<16x128xf32, #tpu.memory_space<vmem>>, vector<16x128xf32>,
    return
  }
  func.func @transform_0(%arg0: i32) -> (i32, i32) {
    %c0_i32 = arith.constant 0 : i32
    %c0_i32_0 = arith.constant 0 : i32
    return %arg0, %c0_i32 : i32, i32
  }
  func.func @transform_1(%arg0: i32) -> (i32, i32) {
    %c0_i32 = arith.constant 0 : i32
    %c0_i32_0 = arith.constant 0 : i32
    %c0_i32_1 = arith.constant 0 : i32
    return %c0_i32, %c0_i32_0 : i32, i32
  }
  func.func @transform_2(%arg0: i32) -> (i32, i32) {
    %c0_i32 = arith.constant 0 : i32
    %c0_i32_0 = arith.constant 0 : i32
    %c0_i32_1 = arith.constant 0 : i32
    return %c0_i32, %c0_i32_0 : i32, i32
  }
  func.func @transform_3(%arg0: i32) -> (i32, i32) {
    %c0_i32 = arith.constant 0 : i32
    %c0_i32_0 = arith.constant 0 : i32
    %c0_i32_1 = arith.constant 0 : i32
    return %c0_i32, %c0_i32_0 : i32, i32
  }
  func.func @transform_4(%arg0: i32) -> (i32, i32) {
    %c0_i32 = arith.constant 0 : i32
    %c0_i32_0 = arith.constant 0 : i32
    %c0_i32_1 = arith.constant 0 : i32
    return %c0_i32, %c0_i32_0 : i32, i32
  }
  func.func @transform_5(%arg0: i32) -> (i32, i32) {
    %c0_i32 = arith.constant 0 : i32
    %c0_i32_0 = arith.constant 0 : i32
    return %arg0, %c0_i32 : i32, i32
  }
  func.func @transform_6(%arg0: i32) -> (i32, i32) {
    %c0_i32 = arith.constant 0 : i32
    %c0_i32_0 = arith.constant 0 : i32
    return %arg0, %c0_i32 : i32, i32
  }
}

</mosaic_0001>

<llo_original>
// kernel: tpu_custom_call.1
$region0: #{tpu_custom_call.1}
  #allocation0 [shape = 'u32[]', space=smem, size = 0x4, offset = 0x4, fixed_abs, tag = 'smem constant byte address 0x4 - core index']
  #allocation1 [shape = 'u32[144,128]{1,0:T(1,128)}', space=vmem, size = 0x12000, scoped, tag = 'internal scratch']
  %s0 = inlined_call_operand.hbm [shape: f32[16,128], index: 0, kind: input, shape index: {}]
  %s1 = inlined_call_operand.hbm [shape: f32[128,128], index: 1, kind: input, shape index: {}]
  %s2 = inlined_call_operand.vmem [shape: f32[1,128], index: 2, kind: input, shape index: {}]
  %s3 = inlined_call_operand.hbm [shape: f32[128,128], index: 3, kind: input, shape index: {}]
  %s4 = inlined_call_operand.vmem [shape: f32[1,128], index: 4, kind: input, shape index: {}]
  %s5 = inlined_call_operand.hbm [shape: f32[16,128], index: 5, kind: output, shape index: {0}]
  %s6 = inlined_call_operand.hbm [shape: f32[16,128], index: 6, kind: output, shape index: {1}]
  %7 = xla_tuple %s5, %s6
  %s8 = sld [smem:[#allocation0]]
  $region50: #{tpu_custom_call.1} parent=0
    _
  %s10 = ssub.s32 1, %s8
  %s11 = scalar_select 0, %s10, %s8
  $region1: #{tpu_custom_call.1} parent=0
    #allocation2 [shape = 'u8[8192]{0}', space=vmem, size = 0x2000, scoped, tag = 'input window, operand 0, single buffered']
    #allocation3 [shape = 's32[1]{0}', space=sflag, size = 0x4, scoped, tag = 'scoped memory for tpu_custom_call.1']
    #allocation4 [shape = 's32[1]{0}', space=sflag, size = 0x4, scoped, tag = 'scoped memory for tpu_custom_call.1']
    #allocation5 [shape = 'u8[65536]{0}', space=vmem, size = 0x10000, scoped, tag = 'input window, operand 1, single buffered']
    #allocation6 [shape = 's32[1]{0}', space=sflag, size = 0x4, scoped, tag = 'scoped memory for tpu_custom_call.1']
    #allocation7 [shape = 'u8[65536]{0}', space=vmem, size = 0x10000, scoped, tag = 'input window, operand 3, single buffered']
    #allocation8 [shape = 'u8[8192]{0}', space=vmem, size = 0x2000, scoped, tag = 'output window, operand 0, single buffered']
    #allocation9 [shape = 'u8[8192]{0}', space=vmem, size = 0x2000, scoped, tag = 'output window, operand 1, single buffered']
    #allocation10 [shape = 's32[1]{0}', space=sflag, size = 0x4, scoped, tag = 'scoped memory for tpu_custom_call.1']
    %12 = vsyncpa [#allocation3], 0
    %13 = vsyncpa [#allocation6], 0
    %14 = vsyncpa [#allocation4], 0
    %15 = vsyncpa [#allocation10], 0
    // Predicated region
    $region2: #{tpu_custom_call.1} parent=1 // pred_check
      _
    $region3: #{tpu_custom_call.1} parent=1 // pred_check_branch
      %17 = sbr.rel (0) target = $region5
    $region4: #{tpu_custom_call.1} parent=1 // pred_region
      %s19 = ssub.s32 256, 256
      %20 = vsyncadd [#allocation3], %s19
      %s21 = sshll.u32 [#allocation2], 4
      %s22 = int_to_ptr.vmem [resolvable:$true] %s21
      %27 = dma.hbm_to_vmem [thread:$0]  %s0, 256, %s22, [#allocation3], 128, 128, 8
    $region5: #{tpu_custom_call.1} parent=1 // pred_fallthru
      _
    // Predicated region
    $region6: #{tpu_custom_call.1} parent=1 // pred_check
      _
    $region7: #{tpu_custom_call.1} parent=1 // pred_check_branch
      %29 = sbr.rel (0) target = $region9
    $region8: #{tpu_custom_call.1} parent=1 // pred_region
      %s31 = ssub.s32 2048, 2048
      %32 = vsyncadd [#allocation6], %s31
      %s33 = sshll.u32 [#allocation5], 4
      %s34 = int_to_ptr.vmem [resolvable:$true] %s33
      %39 = dma.hbm_to_vmem [thread:$0]  %s1, 2048, %s34, [#allocation6], 128, 128, 8
    $region9: #{tpu_custom_call.1} parent=1 // pred_fallthru
      _
    // Predicated region
    $region10: #{tpu_custom_call.1} parent=1 // pred_check
      _
    $region11: #{tpu_custom_call.1} parent=1 // pred_check_branch
      %41 = sbr.rel (0) target = $region13
    $region12: #{tpu_custom_call.1} parent=1 // pred_region
      _
    $region13: #{tpu_custom_call.1} parent=1 // pred_fallthru
      _
    // Predicated region
    $region14: #{tpu_custom_call.1} parent=1 // pred_check
      _
    $region15: #{tpu_custom_call.1} parent=1 // pred_check_branch
      %43 = sbr.rel (0) target = $region17
    $region16: #{tpu_custom_call.1} parent=1 // pred_region
      %s45 = ssub.s32 2048, 2048
      %46 = vsyncadd [#allocation6], %s45
      %s47 = sshll.u32 [#allocation7], 4
      %s48 = int_to_ptr.vmem [resolvable:$true] %s47
      %53 = dma.hbm_to_vmem [thread:$0]  %s3, 2048, %s48, [#allocation6], 128, 128, 8
    $region17: #{tpu_custom_call.1} parent=1 // pred_fallthru
      _
    // Predicated region
    $region18: #{tpu_custom_call.1} parent=1 // pred_check
      _
    $region19: #{tpu_custom_call.1} parent=1 // pred_check_branch
      %55 = sbr.rel (0) target = $region21
    $region20: #{tpu_custom_call.1} parent=1 // pred_region
      _
    $region21: #{tpu_custom_call.1} parent=1 // pred_fallthru
      _
    // Predicated region
    $region22: #{tpu_custom_call.1} parent=1 // pred_check
      _
    $region23: #{tpu_custom_call.1} parent=1 // pred_check_branch
      %57 = sbr.rel (0) target = $region25
    $region24: #{tpu_custom_call.1} parent=1 // pred_region
      %58 = dma.done [#allocation3], 256
    $region25: #{tpu_custom_call.1} parent=1 // pred_fallthru
      _
    // Predicated region
    $region26: #{tpu_custom_call.1} parent=1 // pred_check
      _
    $region27: #{tpu_custom_call.1} parent=1 // pred_check_branch
      %60 = sbr.rel (0) target = $region29
    $region28: #{tpu_custom_call.1} parent=1 // pred_region
      %61 = dma.done [#allocation6], 2048
    $region29: #{tpu_custom_call.1} parent=1 // pred_fallthru
      _
    // Predicated region
    $region30: #{tpu_custom_call.1} parent=1 // pred_check
      _
    $region31: #{tpu_custom_call.1} parent=1 // pred_check_branch
      %63 = sbr.rel (0) target = $region33
    $region32: #{tpu_custom_call.1} parent=1 // pred_region
      %64 = dma.done [#allocation6], 2048
    $region33: #{tpu_custom_call.1} parent=1 // pred_fallthru
      _
    %v65 = vld [vmem:[#allocation2] sm:$0xff]
    %v66 = vld [vmem:[#allocation2 + $0x8] sm:$0xff]
    %v67 = vld [vmem:[#allocation5] sm:$0xff]
    %v68 = vld [vmem:[#allocation5 + $0x8] sm:$0xff]
    %v69 = vld [vmem:[#allocation5 + $0x10] sm:$0xff]
    %v70 = vld [vmem:[#allocation5 + $0x18] sm:$0xff]
    %v71 = vld [vmem:[#allocation5 + $0x20] sm:$0xff]
    %v72 = vld [vmem:[#allocation5 + $0x28] sm:$0xff]
    %v73 = vld [vmem:[#allocation5 + $0x30] sm:$0xff]
    %v74 = vld [vmem:[#allocation5 + $0x38] sm:$0xff]
    %v75 = vld [vmem:[#allocation5 + $0x40] sm:$0xff]
    %v76 = vld [vmem:[#allocation5 + $0x48] sm:$0xff]
    %v77 = vld [vmem:[#allocation5 + $0x50] sm:$0xff]
    %v78 = vld [vmem:[#allocation5 + $0x58] sm:$0xff]
    %v79 = vld [vmem:[#allocation5 + $0x60] sm:$0xff]
    %v80 = vld [vmem:[#allocation5 + $0x68] sm:$0xff]
    %v81 = vld [vmem:[#allocation5 + $0x70] sm:$0xff]
    %v82 = vld [vmem:[#allocation5 + $0x78] sm:$0xff]
    %v83 = vld [vmem:[%s2] sm:$0x1]
    %v85 = vlaneseq
    %v86 = vshrl.u32 %v85, 7
    %v87 = vsub.s32 0, %v86
    %v88 = vrot.slane %v83, %v87
    %90 = vmatprep.subr.mxu0 0.0
    %91 = vmatpush1.msra.mxu0 %v67
    %92 = vmatprep.subr.mxu0 0.0
    %93 = vmatpush1.msra.mxu0 %v68
    %94 = vmatprep.subr.mxu0 0.0
    %95 = vmatpush1.msra.mxu0 %v69
    %96 = vmatprep.subr.mxu0 0.0
    %97 = vmatpush1.msra.mxu0 %v70
    %98 = vmatprep.subr.mxu0 0.0
    %99 = vmatpush1.msra.mxu0 %v71
    %100 = vmatprep.subr.mxu0 0.0
    %101 = vmatpush1.msra.mxu0 %v72
    %102 = vmatprep.subr.mxu0 0.0
    %103 = vmatpush1.msra.mxu0 %v73
    %104 = vmatprep.subr.mxu0 0.0
    %105 = vmatpush1.msra.mxu0 %v74
    %106 = vmatprep.subr.mxu0 0.0
    %107 = vmatpush1.msra.mxu0 %v75
    %108 = vmatprep.subr.mxu0 0.0
    %109 = vmatpush1.msra.mxu0 %v76
    %110 = vmatprep.subr.mxu0 0.0
    %111 = vmatpush1.msra.mxu0 %v77
    %112 = vmatprep.subr.mxu0 0.0
    %113 = vmatpush1.msra.mxu0 %v78
    %114 = vmatprep.subr.mxu0 0.0
    %115 = vmatpush1.msra.mxu0 %v79
    %116 = vmatprep.subr.mxu0 0.0
    %117 = vmatpush1.msra.mxu0 %v80
    %118 = vmatprep.subr.mxu0 0.0
    %119 = vmatpush1.msra.mxu0 %v81
    %120 = vmatprep.subr.mxu0 0.0
    %121 = vmatpush1.msra.mxu0 %v82
    %122 = vmatprep.subr.mxu0 0.0
    %123 = vmatpush1.msra.mxu0 0.0
    %124 = vmatprep.subr.mxu0 0.0
    %125 = vmatpush1.msra.mxu0 0.0
    %126 = vmatprep.subr.mxu0 0.0
    %127 = vmatpush1.msra.mxu0 0.0
    %128 = vmatprep.subr.mxu0 0.0
    %129 = vmatpush1.msra.mxu0 0.0
    %130 = vmatprep.subr.mxu0 0.0
    %131 = vmatpush1.msra.mxu0 0.0
    %132 = vmatprep.subr.mxu0 0.0
    %133 = vmatpush1.msra.mxu0 0.0
    %134 = vmatprep.subr.mxu0 0.0
    %135 = vmatpush1.msra.mxu0 0.0
    %136 = vmatprep.subr.mxu0 0.0
    %137 = vmatpush1.msra.mxu0 0.0
    %138 = vmatprep.subr.mxu0 0.0
    %139 = vmatpush1.msra.mxu0 0.0
    %140 = vmatprep.subr.mxu0 0.0
    %141 = vmatpush1.msra.mxu0 0.0
    %142 = vmatprep.subr.mxu0 0.0
    %143 = vmatpush1.msra.mxu0 0.0
    %144 = vmatprep.subr.mxu0 0.0
    %145 = vmatpush1.msra.mxu0 0.0
    %146 = vmatprep.subr.mxu0 0.0
    %147 = vmatpush1.msra.mxu0 0.0
    %148 = vmatprep.subr.mxu0 0.0
    %149 = vmatpush1.msra.mxu0 0.0
    %150 = vmatprep.subr.mxu0 0.0
    %151 = vmatpush1.msra.mxu0 0.0
    %152 = vmatprep.subr.mxu0 0.0
    %153 = vmatpush1.msra.mxu0 0.0
    %154 = vmatprep.mubr.f32.mxu0 0.0
    %155 = vmatmul.mubr.f32.gmra.mrb[0].mxu0 %v65
    %v156 = vpop.f32.mrb[0].mxu0
    %v157 = vadd.f32 %v88, %v156
    %v158 = vpop.f32.mrb[0].mxu0
    %159 = vmatprep.mubr.f32.mxu0 0.0
    %160 = vmatmul.mubr.f32.gmra.mrb[0].mxu0 %v66
    %v161 = vpop.f32.mrb[0].mxu0
    %v162 = vadd.f32 %v88, %v161
    %v163 = vpop.f32.mrb[0].mxu0
    %164 = vdwg.mxu0
    %vm165 = vcmp.gt.f32.partialorder %v157, 0.0
    %vm166 = vcmp.gt.f32.partialorder %v162, 0.0
    %v167 = vmul.f32 %v157, 0.01
    %v168 = vmul.f32 %v162, 0.01
    %v169 = vsel %vm165, %v157, %v167
    %v170 = vsel %vm166, %v162, %v168
    %171 = vst [vmem:[#allocation9] sm:$0xff] %v169
    %172 = vst [vmem:[#allocation9 + $0x8] sm:$0xff] %v170
    %v173 = vld [vmem:[#allocation7] sm:$0xff]
    %v174 = vld [vmem:[#allocation7 + $0x8] sm:$0xff]
    %v175 = vld [vmem:[#allocation7 + $0x10] sm:$0xff]
    %v176 = vld [vmem:[#allocation7 + $0x18] sm:$0xff]
    %v177 = vld [vmem:[#allocation7 + $0x20] sm:$0xff]
    %v178 = vld [vmem:[#allocation7 + $0x28] sm:$0xff]
    %v179 = vld [vmem:[#allocation7 + $0x30] sm:$0xff]
    %v180 = vld [vmem:[#allocation7 + $0x38] sm:$0xff]
    %v181 = vld [vmem:[#allocation7 + $0x40] sm:$0xff]
    %v182 = vld [vmem:[#allocation7 + $0x48] sm:$0xff]
    %v183 = vld [vmem:[#allocation7 + $0x50] sm:$0xff]
    %v184 = vld [vmem:[#allocation7 + $0x58] sm:$0xff]
    %v185 = vld [vmem:[#allocation7 + $0x60] sm:$0xff]
    %v186 = vld [vmem:[#allocation7 + $0x68] sm:$0xff]
    %v187 = vld [vmem:[#allocation7 + $0x70] sm:$0xff]
    %v188 = vld [vmem:[#allocation7 + $0x78] sm:$0xff]
    %v189 = vld [vmem:[%s4] sm:$0x1]
    %v191 = vlaneseq
    %v192 = vshrl.u32 %v191, 7
    %v193 = vsub.s32 0, %v192
    %v194 = vrot.slane %v189, %v193
    %196 = vmatprep.subr.mxu0 0.0
    %197 = vmatpush1.msra.mxu0 %v173
    %198 = vmatprep.subr.mxu0 0.0
    %199 = vmatpush1.msra.mxu0 %v174
    %200 = vmatprep.subr.mxu0 0.0
    %201 = vmatpush1.msra.mxu0 %v175
    %202 = vmatprep.subr.mxu0 0.0
    %203 = vmatpush1.msra.mxu0 %v176
    %204 = vmatprep.subr.mxu0 0.0
    %205 = vmatpush1.msra.mxu0 %v177
    %206 = vmatprep.subr.mxu0 0.0
    %207 = vmatpush1.msra.mxu0 %v178
    %208 = vmatprep.subr.mxu0 0.0
    %209 = vmatpush1.msra.mxu0 %v179
    %210 = vmatprep.subr.mxu0 0.0
    %211 = vmatpush1.msra.mxu0 %v180
    %212 = vmatprep.subr.mxu0 0.0
    %213 = vmatpush1.msra.mxu0 %v181
    %214 = vmatprep.subr.mxu0 0.0
    %215 = vmatpush1.msra.mxu0 %v182
    %216 = vmatprep.subr.mxu0 0.0
    %217 = vmatpush1.msra.mxu0 %v183
    %218 = vmatprep.subr.mxu0 0.0
    %219 = vmatpush1.msra.mxu0 %v184
    %220 = vmatprep.subr.mxu0 0.0
    %221 = vmatpush1.msra.mxu0 %v185
    %222 = vmatprep.subr.mxu0 0.0
    %223 = vmatpush1.msra.mxu0 %v186
    %224 = vmatprep.subr.mxu0 0.0
    %225 = vmatpush1.msra.mxu0 %v187
    %226 = vmatprep.subr.mxu0 0.0
    %227 = vmatpush1.msra.mxu0 %v188
    %228 = vmatprep.subr.mxu0 0.0
    %229 = vmatpush1.msra.mxu0 0.0
    %230 = vmatprep.subr.mxu0 0.0
    %231 = vmatpush1.msra.mxu0 0.0
    %232 = vmatprep.subr.mxu0 0.0
    %233 = vmatpush1.msra.mxu0 0.0
    %234 = vmatprep.subr.mxu0 0.0
    %235 = vmatpush1.msra.mxu0 0.0
    %236 = vmatprep.subr.mxu0 0.0
    %237 = vmatpush1.msra.mxu0 0.0
    %238 = vmatprep.subr.mxu0 0.0
    %239 = vmatpush1.msra.mxu0 0.0
    %240 = vmatprep.subr.mxu0 0.0
    %241 = vmatpush1.msra.mxu0 0.0
    %242 = vmatprep.subr.mxu0 0.0
    %243 = vmatpush1.msra.mxu0 0.0
    %244 = vmatprep.subr.mxu0 0.0
    %245 = vmatpush1.msra.mxu0 0.0
    %246 = vmatprep.subr.mxu0 0.0
    %247 = vmatpush1.msra.mxu0 0.0
    %248 = vmatprep.subr.mxu0 0.0
    %249 = vmatpush1.msra.mxu0 0.0
    %250 = vmatprep.subr.mxu0 0.0
    %251 = vmatpush1.msra.mxu0 0.0
    %252 = vmatprep.subr.mxu0 0.0
    %253 = vmatpush1.msra.mxu0 0.0
    %254 = vmatprep.subr.mxu0 0.0
    %255 = vmatpush1.msra.mxu0 0.0
    %256 = vmatprep.subr.mxu0 0.0
    %257 = vmatpush1.msra.mxu0 0.0
    %258 = vmatprep.subr.mxu0 0.0
    %259 = vmatpush1.msra.mxu0 0.0
    %260 = vmatprep.mubr.f32.mxu0 0.0
    %261 = vmatmul.mubr.f32.gmra.mrb[0].mxu0 %v169
    %v262 = vpop.f32.mrb[0].mxu0
    %v263 = vadd.f32 %v194, %v262
    %v264 = vpop.f32.mrb[0].mxu0
    %265 = vmatprep.mubr.f32.mxu0 0.0
    %266 = vmatmul.mubr.f32.gmra.mrb[0].mxu0 %v170
    %v267 = vpop.f32.mrb[0].mxu0
    %v268 = vadd.f32 %v194, %v267
    %v269 = vpop.f32.mrb[0].mxu0
    %270 = vdwg.mxu0
    %271 = vst [vmem:[#allocation8] sm:$0xff] %v263
    %272 = vst [vmem:[#allocation8 + $0x8] sm:$0xff] %v268
    // Predicated region
    $region34: #{tpu_custom_call.1} parent=1 // pred_check
      _
    $region35: #{tpu_custom_call.1} parent=1 // pred_check_branch
      %274 = sbr.rel (0) target = $region37
    $region36: #{tpu_custom_call.1} parent=1 // pred_region
      %s276 = ssub.s32 256, 256
      %277 = vsyncadd [#allocation4], %s276
      %s278 = sshll.u32 [#allocation8], 4
      %s279 = int_to_ptr.vmem [resolvable:$true] %s278
      %284 = dma.vmem_to_hbm [thread:$0]  %s279, 256, %s5, [#allocation4], 128, 128, 8
    $region37: #{tpu_custom_call.1} parent=1 // pred_fallthru
      _
    // Predicated region
    $region38: #{tpu_custom_call.1} parent=1 // pred_check
      _
    $region39: #{tpu_custom_call.1} parent=1 // pred_check_branch
      %286 = sbr.rel (0) target = $region41
    $region40: #{tpu_custom_call.1} parent=1 // pred_region
      %s288 = ssub.s32 256, 256
      %289 = vsyncadd [#allocation10], %s288
      %s290 = sshll.u32 [#allocation9], 4
      %s291 = int_to_ptr.vmem [resolvable:$true] %s290
      %296 = dma.vmem_to_hbm [thread:$0]  %s291, 256, %s6, [#allocation10], 128, 128, 8
    $region41: #{tpu_custom_call.1} parent=1 // pred_fallthru
      _
    // Predicated region
    $region42: #{tpu_custom_call.1} parent=1 // pred_check
      _
    $region43: #{tpu_custom_call.1} parent=1 // pred_check_branch
      %298 = sbr.rel (0) target = $region45
    $region44: #{tpu_custom_call.1} parent=1 // pred_region
      %299 = dma.done [#allocation4], 256
    $region45: #{tpu_custom_call.1} parent=1 // pred_fallthru
      _
    // Predicated region
    $region46: #{tpu_custom_call.1} parent=1 // pred_check
      _
    $region47: #{tpu_custom_call.1} parent=1 // pred_check_branch
      %301 = sbr.rel (0) target = $region49
    $region48: #{tpu_custom_call.1} parent=1 // pred_region
      %302 = dma.done [#allocation10], 256
    $region49: #{tpu_custom_call.1} parent=1 // pred_fallthru
      _
    %303 = vsyncpa [#allocation3], 1
    %304 = vsyncpa [#allocation6], 1
    %305 = vsyncpa [#allocation4], 1
    %306 = vsyncpa [#allocation10], 1

</llo_original>
